<compile_context>
chip_gen: v7x
topology: tpu7x:2x2x1
jax: 0.10.0
libtpu: 0.0.40
codegen_flags: <defaults>
</compile_context>

<pallas_src>
import functools

import jax
import jax.numpy as jnp
from jax.experimental import pallas as pl
from jax.experimental.pallas import tpu as pltpu


def _dilconv_main_kernel(x_ref, dw_ref, pw_ref, y_ref, st_ref, *,
                         th, dilation, kh, kw, w_out, c_in):
    """ReLU -> depthwise dilated conv -> 1x1 conv, plus BN partial stats.

    x_ref:  (1, Hp, Wp*C_in)          padded input image, W/C folded on lanes
    dw_ref: (KH*KW, W_out*C_in)       per-tap depthwise weights, lane-tiled
    pw_ref: (W_out*C_in, W_out*C_out) block-diagonal pointwise weights
    y_ref:  (1, TH, W_out*C_out)      un-normalized output tile (lane-dense)
    st_ref: (1, 1, 2, W_out*C_out)    per-tile [sum; sum-of-squares]
    """
    wc_in = w_out * c_in
    halo = dilation * (kh - 1)
    row0 = pl.multiple_of(pl.program_id(1) * th, th)

    # Load the row window (tile + halo) once; apply ReLU once.
    xw = jnp.maximum(x_ref[0, pl.ds(row0, th + halo), :].astype(jnp.float32),
                     0.0)

    # Depthwise dilated conv: each tap is a contiguous (sublane, lane) slice.
    acc = xw[0:th, 0:wc_in] * dw_ref[0:1, :]          # first tap initializes
    for i in range(kh):
        for j in range(kw):
            if i == 0 and j == 0:
                continue
            tap = i * kw + j
            lane0 = j * dilation * c_in
            patch = xw[i * dilation:i * dilation + th, lane0:lane0 + wc_in]
            acc = acc + patch * dw_ref[tap:tap + 1, :]

    # Pointwise 1x1 conv as a single lane-dense matmul (block-diag weights).
    y = jnp.dot(acc, pw_ref[...], preferred_element_type=jnp.float32)

    y_ref[0, :, :] = y
    # One-pass BN partials (sum, sum of squares) over this tile's rows.
    st_ref[0, 0, 0:1, :] = jnp.sum(y, axis=0, keepdims=True)
    st_ref[0, 0, 1:2, :] = jnp.sum(y * y, axis=0, keepdims=True)


def _bn_apply_kernel(y_ref, scale_ref, shift_ref, o_ref):
    """Finalize pass: lane-dense y * scale + shift (scale/shift lane-tiled)."""
    o_ref[...] = y_ref[...] * scale_ref[...] + shift_ref[...]


@functools.partial(jax.jit,
                   static_argnames=("stride", "padding", "dilation", "eps"))
def dilconv_forward(x_nchw, dw_khwc, pw_cinout, gamma, beta, *,
                    stride, padding, dilation, eps=1e-5):
    n, c_in, h, w = x_nchw.shape
    kh, kw, _ = dw_khwc.shape
    c_out = pw_cinout.shape[1]
    # TODO(synk): stride > 1 would need an even/odd decomposition of the folded
    # W*C lane axis; only stride == 1 (the exercised DilConv config) is lowered.
    assert stride == 1

    h_out = (h + 2 * padding - dilation * (kh - 1) - 1) // stride + 1
    w_out = (w + 2 * padding - dilation * (kw - 1) - 1) // stride + 1
    hp = h + 2 * padding
    wp = w + 2 * padding
    wc_in = w_out * c_in
    wc_out = w_out * c_out

    th = 8 if h_out % 8 == 0 else h_out        # output-row tile (sublane mult)
    n_h = h_out // th

    # Layout plumbing (one fused XLA op): NCHW -> padded NHWC, fold (W, C).
    x_nhwc = jnp.transpose(x_nchw, (0, 2, 3, 1)).astype(jnp.float32)
    x_fold = jnp.pad(
        x_nhwc, ((0, 0), (padding, padding), (padding, padding), (0, 0))
    ).reshape(n, hp, wp * c_in)

    # Depthwise taps tiled along the folded lane axis: (KH*KW, W_out*C_in).
    dw_lanes = jnp.tile(dw_khwc.reshape(kh * kw, c_in).astype(jnp.float32),
                        (1, w_out))
    # Block-diagonal pointwise weights: (W_out*C_in, W_out*C_out).
    pw_big = jnp.kron(jnp.eye(w_out, dtype=jnp.float32),
                      pw_cinout.astype(jnp.float32))

    flops = 2 * n * h_out * w_out * (kh * kw * c_in + c_in * c_out)
    bytes_accessed = 4 * (x_fold.size + dw_lanes.size + pw_big.size
                          + n * h_out * wc_out + n * n_h * 2 * wc_out)

    kernel = functools.partial(
        _dilconv_main_kernel, th=th, dilation=dilation, kh=kh, kw=kw,
        w_out=w_out, c_in=c_in)

    y_unnorm, stats = pl.pallas_call(
        kernel,
        grid=(n, n_h),
        in_specs=[
            pl.BlockSpec((1, hp, wp * c_in), lambda nb, hb: (nb, 0, 0)),
            pl.BlockSpec((kh * kw, wc_in), lambda nb, hb: (0, 0)),
            pl.BlockSpec((wc_in, wc_out), lambda nb, hb: (0, 0)),
        ],
        out_specs=(
            pl.BlockSpec((1, th, wc_out), lambda nb, hb: (nb, hb, 0)),
            pl.BlockSpec((1, 1, 2, wc_out), lambda nb, hb: (nb, hb, 0, 0)),
        ),
        out_shape=(
            jax.ShapeDtypeStruct((n, h_out, wc_out), jnp.float32),
            jax.ShapeDtypeStruct((n, n_h, 2, wc_out), jnp.float32),
        ),
        compiler_params=pltpu.CompilerParams(
            dimension_semantics=("parallel", "parallel"),
            vmem_limit_bytes=16 * 1024 * 1024),   # tiles are KB-scale; safe on v5e/v6e/v7x
        cost_estimate=pl.CostEstimate(flops=flops, transcendentals=0,
                                      bytes_accessed=bytes_accessed),
    )(x_fold, dw_lanes, pw_big)

    # BN finalize, step 1 (tiny XLA ops): global per-channel stats.
    st = stats.reshape(n * n_h, 2, w_out, c_out)
    count = n * h_out * w_out
    mean = jnp.sum(st[:, 0], axis=(0, 1)) / count
    var = jnp.sum(st[:, 1], axis=(0, 1)) / count - mean * mean
    inv_std = jax.lax.rsqrt(var + eps)
    scale_c = gamma.astype(jnp.float32) * inv_std
    shift_c = beta.astype(jnp.float32) - mean * scale_c
    scale = jnp.tile(scale_c, w_out).reshape(1, wc_out)
    shift = jnp.tile(shift_c, w_out).reshape(1, wc_out)

    # BN finalize, step 2: normalize in place (aliased y buffer), lane-dense.
    out_fold = pl.pallas_call(
        _bn_apply_kernel,
        grid=(n, n_h),
        in_specs=[
            pl.BlockSpec((1, th, wc_out), lambda nb, hb: (nb, hb, 0)),
            pl.BlockSpec((1, wc_out), lambda nb, hb: (0, 0)),
            pl.BlockSpec((1, wc_out), lambda nb, hb: (0, 0)),
        ],
        out_specs=pl.BlockSpec((1, th, wc_out), lambda nb, hb: (nb, hb, 0)),
        out_shape=jax.ShapeDtypeStruct((n, h_out, wc_out), jnp.float32),
        input_output_aliases={0: 0},
        compiler_params=pltpu.CompilerParams(
            dimension_semantics=("parallel", "parallel")),
    )(y_unnorm, scale, shift)

    # Layout plumbing: unfold lanes, NHWC -> NCHW to match PyTorch.
    out_nhwc = out_fold.reshape(n, h_out, w_out, c_out)
    return jnp.transpose(out_nhwc, (0, 3, 1, 2))


def dilconv_reference(x_nchw, dw_oihw, pw_oihw, gamma, beta,
                      *, stride, padding, dilation, eps=1e-5):
    """Pure-JAX reference mirroring the PyTorch module forward."""
    c_in = x_nchw.shape[1]
    xr = jnp.maximum(x_nchw, 0.0)
    y = jax.lax.conv_general_dilated(
        xr, dw_oihw, window_strides=(stride, stride),
        padding=[(padding, padding), (padding, padding)],
        rhs_dilation=(dilation, dilation),
        dimension_numbers=("NCHW", "OIHW", "NCHW"),
        feature_group_count=c_in)
    y = jax.lax.conv_general_dilated(
        y, pw_oihw, window_strides=(1, 1), padding="VALID",
        dimension_numbers=("NCHW", "OIHW", "NCHW"))
    mean = jnp.mean(y, axis=(0, 2, 3), keepdims=True)
    var = jnp.mean((y - mean) ** 2, axis=(0, 2, 3), keepdims=True)
    yn = (y - mean) / jnp.sqrt(var + eps)
    return yn * gamma.reshape(1, -1, 1, 1) + beta.reshape(1, -1, 1, 1)


if __name__ == "__main__":
    # DilConv(C_in=4, C_out=8, kernel_size=3, stride=1, padding=2, dilation=2)
    N, C_IN, H, W = 2, 4, 16, 16
    C_OUT, K, STRIDE, PAD, DIL = 8, 3, 1, 2, 2

    key = jax.random.PRNGKey(0)
    kx, kdw, kpw = jax.random.split(key, 3)

    x = jax.random.normal(kx, (N, C_IN, H, W), dtype=jnp.float32)

    # PyTorch weight shapes: depthwise (C_in,1,K,K), pointwise (C_out,C_in,1,1).
    dw_oihw = jax.random.normal(kdw, (C_IN, 1, K, K), dtype=jnp.float32) * 0.2
    pw_oihw = jax.random.normal(kpw, (C_OUT, C_IN, 1, 1), dtype=jnp.float32) * 0.2
    gamma = jnp.ones((C_OUT,), jnp.float32)   # BatchNorm2d affine init
    beta = jnp.zeros((C_OUT,), jnp.float32)

    # Kernel-friendly weight layouts.
    dw_khwc = jnp.transpose(dw_oihw[:, 0], (1, 2, 0))       # (K, K, C_in)
    pw_cinout = jnp.transpose(pw_oihw[:, :, 0, 0], (1, 0))  # (C_in, C_out)

    out = dilconv_forward(x, dw_khwc, pw_cinout, gamma, beta,
                          stride=STRIDE, padding=PAD, dilation=DIL)
    out = jax.block_until_ready(out)

    ref = dilconv_reference(x, dw_oihw, pw_oihw, gamma, beta,
                            stride=STRIDE, padding=PAD, dilation=DIL)
    ref = jax.block_until_ready(ref)

    assert out.shape == ref.shape == (N, C_OUT, H, W), (out.shape, ref.shape)
    max_err = float(jnp.max(jnp.abs(out - ref)))
    assert jnp.allclose(out, ref, atol=2e-4, rtol=2e-4), max_err

    print("KERNEL_OK")
</pallas_src>

<mosaic_0001>
module attributes {stable_mosaic.version = 11 : i64} {
  func.func @_dilconv_main_kernel(%arg0: i32, %arg1: i32, %arg2: memref<1x20x80xf32, #tpu.memory_space<vmem>>, %arg3: memref<9x64xf32, #tpu.memory_space<vmem>>, %arg4: memref<64x128xf32, #tpu.memory_space<vmem>>, %arg5: memref<1x8x128xf32, #tpu.memory_space<vmem>>, %arg6: memref<1x1x2x128xf32, #tpu.memory_space<vmem>>) attributes {dimension_semantics = [#tpu.dimension_semantics<parallel>, #tpu.dimension_semantics<parallel>], iteration_bounds = array<i64: 2, 2>, scalar_prefetch = 0 : i64, scratch_operands = 0 : i64, tpu.core_type = #tpu.core_type<tc>, window_params = [{transform_indices = @transform_0, window_bounds = array<i64: 1, 20, 80>}, {pipeline_mode = #tpu.pipeline_mode<synchronous>, transform_indices = @transform_1, window_bounds = array<i64: 9, 64>}, {pipeline_mode = #tpu.pipeline_mode<synchronous>, transform_indices = @transform_2, window_bounds = array<i64: 64, 128>}, {transform_indices = @transform_3, window_bounds = array<i64: 1, 8, 128>}, {transform_indices = @transform_4, window_bounds = array<i64: 1, 1, 2, 128>}]} {
    %c8_i32 = arith.constant 8 : i32
    %0 = arith.muli %arg1, %c8_i32 : i32
    %1 = tpu.assume_multiple %0, 8 : i32
    %c0 = arith.constant 0 : index
    %2 = arith.index_cast %1 : i32 to index
    %c0_0 = arith.constant 0 : index
    %3 = vector.load %arg2[%c0, %2, %c0_0] : memref<1x20x80xf32, #tpu.memory_space<vmem>>, vector<1x12x80xf32>
    %4 = vector.shape_cast %3 : vector<1x12x80xf32> to vector<12x80xf32>
    %cst = arith.constant 0.000000e+00 : f32
    %5 = vector.broadcast %cst : f32 to vector<12x80xf32>
    %6 = arith.maximumf %4, %5 : vector<12x80xf32>
    %7 = vector.extract_strided_slice %6 {offsets = [0, 0], sizes = [8, 64], strides = [1, 1]} : vector<12x80xf32> to vector<8x64xf32>
    %c0_1 = arith.constant 0 : index
    %c0_2 = arith.constant 0 : index
    %8 = vector.load %arg3[%c0_1, %c0_2] : memref<9x64xf32, #tpu.memory_space<vmem>>, vector<1x64xf32>
    %9 = vector.broadcast %8 : vector<1x64xf32> to vector<8x64xf32>
    %10 = arith.mulf %7, %9 : vector<8x64xf32>
    %11 = vector.extract_strided_slice %6 {offsets = [0, 8], sizes = [8, 64], strides = [1, 1]} : vector<12x80xf32> to vector<8x64xf32>
    %c1 = arith.constant 1 : index
    %c0_3 = arith.constant 0 : index
    %12 = vector.load %arg3[%c1, %c0_3] : memref<9x64xf32, #tpu.memory_space<vmem>>, vector<1x64xf32>
    %13 = vector.broadcast %12 : vector<1x64xf32> to vector<8x64xf32>
    %14 = arith.mulf %11, %13 : vector<8x64xf32>
    %15 = arith.addf %10, %14 : vector<8x64xf32>
    %16 = vector.extract_strided_slice %6 {offsets = [0, 16], sizes = [8, 64], strides = [1, 1]} : vector<12x80xf32> to vector<8x64xf32>
    %c2 = arith.constant 2 : index
    %c0_4 = arith.constant 0 : index
    %17 = vector.load %arg3[%c2, %c0_4] : memref<9x64xf32, #tpu.memory_space<vmem>>, vector<1x64xf32>
    %18 = vector.broadcast %17 : vector<1x64xf32> to vector<8x64xf32>
    %19 = arith.mulf %16, %18 : vector<8x64xf32>
    %20 = arith.addf %15, %19 : vector<8x64xf32>
    %21 = vector.extract_strided_slice %6 {offsets = [2, 0], sizes = [8, 64], strides = [1, 1]} : vector<12x80xf32> to vector<8x64xf32>
    %c3 = arith.constant 3 : index
    %c0_5 = arith.constant 0 : index
    %22 = vector.load %arg3[%c3, %c0_5] : memref<9x64xf32, #tpu.memory_space<vmem>>, vector<1x64xf32>
    %23 = vector.broadcast %22 : vector<1x64xf32> to vector<8x64xf32>
    %24 = arith.mulf %21, %23 : vector<8x64xf32>
    %25 = arith.addf %20, %24 : vector<8x64xf32>
    %26 = vector.extract_strided_slice %6 {offsets = [2, 8], sizes = [8, 64], strides = [1, 1]} : vector<12x80xf32> to vector<8x64xf32>
    %c4 = arith.constant 4 : index
    %c0_6 = arith.constant 0 : index
    %27 = vector.load %arg3[%c4, %c0_6] : memref<9x64xf32, #tpu.memory_space<vmem>>, vector<1x64xf32>
    %28 = vector.broadcast %27 : vector<1x64xf32> to vector<8x64xf32>
    %29 = arith.mulf %26, %28 : vector<8x64xf32>
    %30 = arith.addf %25, %29 : vector<8x64xf32>
    %31 = vector.extract_strided_slice %6 {offsets = [2, 16], sizes = [8, 64], strides = [1, 1]} : vector<12x80xf32> to vector<8x64xf32>
    %c5 = arith.constant 5 : index
    %c0_7 = arith.constant 0 : index
    %32 = vector.load %arg3[%c5, %c0_7] : memref<9x64xf32, #tpu.memory_space<vmem>>, vector<1x64xf32>
    %33 = vector.broadcast %32 : vector<1x64xf32> to vector<8x64xf32>
    %34 = arith.mulf %31, %33 : vector<8x64xf32>
    %35 = arith.addf %30, %34 : vector<8x64xf32>
    %36 = vector.extract_strided_slice %6 {offsets = [4, 0], sizes = [8, 64], strides = [1, 1]} : vector<12x80xf32> to vector<8x64xf32>
    %c6 = arith.constant 6 : index
    %c0_8 = arith.constant 0 : index
    %37 = vector.load %arg3[%c6, %c0_8] : memref<9x64xf32, #tpu.memory_space<vmem>>, vector<1x64xf32>
    %38 = vector.broadcast %37 : vector<1x64xf32> to vector<8x64xf32>
    %39 = arith.mulf %36, %38 : vector<8x64xf32>
    %40 = arith.addf %35, %39 : vector<8x64xf32>
    %41 = vector.extract_strided_slice %6 {offsets = [4, 8], sizes = [8, 64], strides = [1, 1]} : vector<12x80xf32> to vector<8x64xf32>
    %c7 = arith.constant 7 : index
    %c0_9 = arith.constant 0 : index
    %42 = vector.load %arg3[%c7, %c0_9] : memref<9x64xf32, #tpu.memory_space<vmem>>, vector<1x64xf32>
    %43 = vector.broadcast %42 : vector<1x64xf32> to vector<8x64xf32>
    %44 = arith.mulf %41, %43 : vector<8x64xf32>
    %45 = arith.addf %40, %44 : vector<8x64xf32>
    %46 = vector.extract_strided_slice %6 {offsets = [4, 16], sizes = [8, 64], strides = [1, 1]} : vector<12x80xf32> to vector<8x64xf32>
    %c8 = arith.constant 8 : index
    %c0_10 = arith.constant 0 : index
    %47 = vector.load %arg3[%c8, %c0_10] : memref<9x64xf32, #tpu.memory_space<vmem>>, vector<1x64xf32>
    %48 = vector.broadcast %47 : vector<1x64xf32> to vector<8x64xf32>
    %49 = arith.mulf %46, %48 : vector<8x64xf32>
    %50 = arith.addf %45, %49 : vector<8x64xf32>
    %c0_11 = arith.constant 0 : index
    %c0_12 = arith.constant 0 : index
    %51 = vector.load %arg4[%c0_11, %c0_12] : memref<64x128xf32, #tpu.memory_space<vmem>>, vector<64x128xf32>
    %cst_13 = arith.constant dense<0.000000e+00> : vector<8x128xf32>
    %52 = tpu.matmul %50, %51, %cst_13 {dimension_numbers = #tpu.dot_dimension_numbers<[1], [0], [0], [1], [0, 0, 1, 1], [], []>} : vector<8x64xf32>, vector<64x128xf32>, vector<8x128xf32> -> vector<8x128xf32>
    %c0_14 = arith.constant 0 : index
    %c0_15 = arith.constant 0 : index
    %c0_16 = arith.constant 0 : index
    %53 = vector.load %arg5[%c0_14, %c0_15, %c0_16] : memref<1x8x128xf32, #tpu.memory_space<vmem>>, vector<1x8x128xf32>
    %54 = vector.shape_cast %53 : vector<1x8x128xf32> to vector<8x128xf32>
    %55 = vector.shape_cast %52 : vector<8x128xf32> to vector<1x8x128xf32>
    tpu.vector_store %arg5[%c0_14, %c0_15, %c0_16], %55 {strides = array<i32>} : memref<1x8x128xf32, #tpu.memory_space<vmem>>, vector<1x8x128xf32>,
    %cst_17 = arith.constant dense<0.000000e+00> : vector<128xf32>
    %56 = vector.multi_reduction <add>, %52, %cst_17 [0] : vector<8x128xf32> to vector<128xf32>
    %57 = vector.shape_cast %56 : vector<128xf32> to vector<1x128xf32>
    %c0_18 = arith.constant 0 : index
    %c0_19 = arith.constant 0 : index
    %c0_20 = arith.constant 0 : index
    %c0_21 = arith.constant 0 : index
    %58 = vector.load %arg6[%c0_18, %c0_19, %c0_20, %c0_21] : memref<1x1x2x128xf32, #tpu.memory_space<vmem>>, vector<1x1x1x128xf32>
    %59 = vector.shape_cast %58 : vector<1x1x1x128xf32> to vector<1x128xf32>
    %60 = vector.shape_cast %57 : vector<1x128xf32> to vector<1x1x1x128xf32>
    tpu.vector_store %arg6[%c0_18, %c0_19, %c0_20, %c0_21], %60 {strides = array<i32>} : memref<1x1x2x128xf32, #tpu.memory_space<vmem>>, vector<1x1x1x128xf32>,
    %61 = arith.mulf %52, %52 : vector<8x128xf32>
    %cst_22 = arith.constant dense<0.000000e+00> : vector<128xf32>
    %62 = vector.multi_reduction <add>, %61, %cst_22 [0] : vector<8x128xf32> to vector<128xf32>
    %63 = vector.shape_cast %62 : vector<128xf32> to vector<1x128xf32>
    %c0_23 = arith.constant 0 : index
    %c0_24 = arith.constant 0 : index
    %c1_25 = arith.constant 1 : index
    %c0_26 = arith.constant 0 : index
    %64 = vector.load %arg6[%c0_23, %c0_24, %c1_25, %c0_26] : memref<1x1x2x128xf32, #tpu.memory_space<vmem>>, vector<1x1x1x128xf32>
    %65 = vector.shape_cast %64 : vector<1x1x1x128xf32> to vector<1x128xf32>
    %66 = vector.shape_cast %63 : vector<1x128xf32> to vector<1x1x1x128xf32>
    tpu.vector_store %arg6[%c0_23, %c0_24, %c1_25, %c0_26], %66 {strides = array<i32>} : memref<1x1x2x128xf32, #tpu.memory_space<vmem>>, vector<1x1x1x128xf32>,
    return
  }
  func.func @transform_0(%arg0: i32, %arg1: i32) -> (i32, i32, i32) {
    %c0_i32 = arith.constant 0 : i32
    %c0_i32_0 = arith.constant 0 : i32
    %c0_i32_1 = arith.constant 0 : i32
    return %arg0, %c0_i32, %c0_i32_0 : i32, i32, i32
  }
  func.func @transform_1(%arg0: i32, %arg1: i32) -> (i32, i32) {
    %c0_i32 = arith.constant 0 : i32
    %c0_i32_0 = arith.constant 0 : i32
    %c0_i32_1 = arith.constant 0 : i32
    return %c0_i32, %c0_i32_0 : i32, i32
  }
  func.func @transform_2(%arg0: i32, %arg1: i32) -> (i32, i32) {
    %c0_i32 = arith.constant 0 : i32
    %c0_i32_0 = arith.constant 0 : i32
    %c0_i32_1 = arith.constant 0 : i32
    return %c0_i32, %c0_i32_0 : i32, i32
  }
  func.func @transform_3(%arg0: i32, %arg1: i32) -> (i32, i32, i32) {
    %c0_i32 = arith.constant 0 : i32
    %c0_i32_0 = arith.constant 0 : i32
    return %arg0, %arg1, %c0_i32 : i32, i32, i32
  }
  func.func @transform_4(%arg0: i32, %arg1: i32) -> (i32, i32, i32, i32) {
    %c0_i32 = arith.constant 0 : i32
    %c0_i32_0 = arith.constant 0 : i32
    %c0_i32_1 = arith.constant 0 : i32
    return %arg0, %arg1, %c0_i32, %c0_i32_0 : i32, i32, i32, i32
  }
}

module attributes {stable_mosaic.version = 11 : i64} {
  func.func @_bn_apply_kernel(%arg0: i32, %arg1: i32, %arg2: memref<1x8x128xf32, #tpu.memory_space<vmem>>, %arg3: memref<1x128xf32, #tpu.memory_space<vmem>>, %arg4: memref<1x128xf32, #tpu.memory_space<vmem>>, %arg5: memref<1x8x128xf32, #tpu.memory_space<vmem>>) attributes {dimension_semantics = [#tpu.dimension_semantics<parallel>, #tpu.dimension_semantics<parallel>], iteration_bounds = array<i64: 2, 2>, scalar_prefetch = 0 : i64, scratch_operands = 0 : i64, tpu.core_type = #tpu.core_type<tc>, window_params = [{transform_indices = @transform_0, window_bounds = array<i64: 1, 8, 128>}, {pipeline_mode = #tpu.pipeline_mode<synchronous>, transform_indices = @transform_1, window_bounds = array<i64: 1, 128>}, {pipeline_mode = #tpu.pipeline_mode<synchronous>, transform_indices = @transform_2, window_bounds = array<i64: 1, 128>}, {transform_indices = @transform_3, window_bounds = array<i64: 1, 8, 128>}]} {
    %c0 = arith.constant 0 : index
    %c0_0 = arith.constant 0 : index
    %c0_1 = arith.constant 0 : index
    %0 = vector.load %arg2[%c0, %c0_0, %c0_1] : memref<1x8x128xf32, #tpu.memory_space<vmem>>, vector<1x8x128xf32>
    %c0_2 = arith.constant 0 : index
    %c0_3 = arith.constant 0 : index
    %1 = vector.load %arg3[%c0_2, %c0_3] : memref<1x128xf32, #tpu.memory_space<vmem>>, vector<1x128xf32>
    %2 = vector.shape_cast %1 : vector<1x128xf32> to vector<1x1x128xf32>
    %3 = vector.broadcast %2 : vector<1x1x128xf32> to vector<1x8x128xf32>
    %4 = arith.mulf %0, %3 : vector<1x8x128xf32>
    %c0_4 = arith.constant 0 : index
    %c0_5 = arith.constant 0 : index
    %5 = vector.load %arg4[%c0_4, %c0_5] : memref<1x128xf32, #tpu.memory_space<vmem>>, vector<1x128xf32>
    %6 = vector.shape_cast %5 : vector<1x128xf32> to vector<1x1x128xf32>
    %7 = vector.broadcast %6 : vector<1x1x128xf32> to vector<1x8x128xf32>
    %8 = arith.addf %4, %7 : vector<1x8x128xf32>
    %c0_6 = arith.constant 0 : index
    %c0_7 = arith.constant 0 : index
    %c0_8 = arith.constant 0 : index
    %9 = vector.load %arg5[%c0_6, %c0_7, %c0_8] : memref<1x8x128xf32, #tpu.memory_space<vmem>>, vector<1x8x128xf32>
    tpu.vector_store %arg5[%c0_6, %c0_7, %c0_8], %8 {strides = array<i32>} : memref<1x8x128xf32, #tpu.memory_space<vmem>>, vector<1x8x128xf32>,
    return
  }
  func.func @transform_0(%arg0: i32, %arg1: i32) -> (i32, i32, i32) {
    %c0_i32 = arith.constant 0 : i32
    %c0_i32_0 = arith.constant 0 : i32
    return %arg0, %arg1, %c0_i32 : i32, i32, i32
  }
  func.func @transform_1(%arg0: i32, %arg1: i32) -> (i32, i32) {
    %c0_i32 = arith.constant 0 : i32
    %c0_i32_0 = arith.constant 0 : i32
    %c0_i32_1 = arith.constant 0 : i32
    return %c0_i32, %c0_i32_0 : i32, i32
  }
  func.func @transform_2(%arg0: i32, %arg1: i32) -> (i32, i32) {
    %c0_i32 = arith.constant 0 : i32
    %c0_i32_0 = arith.constant 0 : i32
    %c0_i32_1 = arith.constant 0 : i32
    return %c0_i32, %c0_i32_0 : i32, i32
  }
  func.func @transform_3(%arg0: i32, %arg1: i32) -> (i32, i32, i32) {
    %c0_i32 = arith.constant 0 : i32
    %c0_i32_0 = arith.constant 0 : i32
    return %arg0, %arg1, %c0_i32 : i32, i32, i32
  }
}

</mosaic_0001>

<llo_original>
// kernel: tile.21
$region0: #{tile.21}
  #allocation0 [shape = 's32[1]{0}', space=sflag, size = 0x4, scoped, tag = 'scoped memory for tile.21']
  %s0 = inlined_call_operand.vmem [shape: f32[8], index: 0, kind: input, shape index: {}]
  %s1 = inlined_call_operand.vmem [shape: f32[16,8], index: 1, kind: output, shape index: {}]
  // Predicated region
  $region2: #{tile.21} parent=0 // pred_check
    _
  $region3: #{tile.21} parent=0 // pred_check_branch
    %3 = sbr.rel (0) target = $region5
  $region4: #{tile.21} parent=0 // pred_region
    _
  $region5: #{tile.21} parent=0 // pred_fallthru
    _
  %v4 = vld [vmem:[%s0] ss:$0 sm:$0xff]
  %5 = vst [vmem:[%s1] sm:$0xff] %v4
  %s6 = scalar_lea.vmem %s1, 8
  %7 = vst [vmem:[%s6] sm:$0xff] %v4

// kernel: tile.22
$region0: #{tile.22}
  %s0 = inlined_call_operand.vmem [shape: f32[16,8], index: 0, kind: input, shape index: {}]
  %s1 = inlined_call_operand.vmem [shape: f32[1,128], index: 1, kind: output, shape index: {}]
  $region1: #{tile.22} parent=0
    #allocation0 [shape = 'u8[4096]{0}', space=vmem, size = 0x1000, scoped, tag = 'scoped mem for output reshape']
    %v2 = vld [vmem:[%s0] sm:$0x1]
    %vm3 = vcmask 64512
    %4 = vst.msk [vmem:[#allocation0] sm:$0x1] %vm3, %v2
    %s5 = scalar_lea.vmem %s0, 15
    %v6 = vld [vmem:[%s5] sm:$0x1]
    %7 = vrot.lane.b32.xlu0 %v6, 120
    %v8 = vpop.permute.xlu0 %7
    %vm9 = vcmask 1048512
    %10 = vst.msk [vmem:[#allocation0] sm:$0x1] %vm9, %v8
    %s11 = scalar_lea.vmem %s0, 14
    %v12 = vld [vmem:[%s11] sm:$0x1]
    %13 = vrot.lane.b32.xlu0 %v12, 112
    %v14 = vpop.permute.xlu0 %13
    %vm15 = vcmask 982912
    %16 = vst.msk [vmem:[#allocation0] sm:$0x1] %vm15, %v14
    %s17 = scalar_lea.vmem %s0, 13
    %v18 = vld [vmem:[%s17] sm:$0x1]
    %19 = vrot.lane.b32.xlu0 %v18, 104
    %v20 = vpop.permute.xlu0 %19
    %vm21 = vcmask 917312
    %22 = vst.msk [vmem:[#allocation0] sm:$0x1] %vm21, %v20
    %s23 = scalar_lea.vmem %s0, 12
    %v24 = vld [vmem:[%s23] sm:$0x1]
    %25 = vrot.lane.b32.xlu0 %v24, 96
    %v26 = vpop.permute.xlu0 %25
    %vm27 = vcmask 851712
    %28 = vst.msk [vmem:[#allocation0] sm:$0x1] %vm27, %v26
    %s29 = scalar_lea.vmem %s0, 11
    %v30 = vld [vmem:[%s29] sm:$0x1]
    %31 = vrot.lane.b32.xlu0 %v30, 88
    %v32 = vpop.permute.xlu0 %31
    %vm33 = vcmask 786112
    %34 = vst.msk [vmem:[#allocation0] sm:$0x1] %vm33, %v32
    %s35 = scalar_lea.vmem %s0, 10
    %v36 = vld [vmem:[%s35] sm:$0x1]
    %37 = vrot.lane.b32.xlu0 %v36, 80
    %v38 = vpop.permute.xlu0 %37
    %vm39 = vcmask 720512
    %40 = vst.msk [vmem:[#allocation0] sm:$0x1] %vm39, %v38
    %s41 = scalar_lea.vmem %s0, 9
    %v42 = vld [vmem:[%s41] sm:$0x1]
    %43 = vrot.lane.b32.xlu0 %v42, 72
    %v44 = vpop.permute.xlu0 %43
    %vm45 = vcmask 654912
    %46 = vst.msk [vmem:[#allocation0] sm:$0x1] %vm45, %v44
    %s47 = scalar_lea.vmem %s0, 8
    %v48 = vld [vmem:[%s47] sm:$0x1]
    %49 = vrot.lane.b32.xlu0 %v48, 64
    %v50 = vpop.permute.xlu0 %49
    %vm51 = vcmask 589312
    %52 = vst.msk [vmem:[#allocation0] sm:$0x1] %vm51, %v50
    %s53 = scalar_lea.vmem %s0, 7
    %v54 = vld [vmem:[%s53] sm:$0x1]
    %55 = vrot.lane.b32.xlu0 %v54, 56
    %v56 = vpop.permute.xlu0 %55
    %vm57 = vcmask 523712
    %58 = vst.msk [vmem:[#allocation0] sm:$0x1] %vm57, %v56
    %s59 = scalar_lea.vmem %s0, 6
    %v60 = vld [vmem:[%s59] sm:$0x1]
    %61 = vrot.lane.b32.xlu0 %v60, 48
    %v62 = vpop.permute.xlu0 %61
    %vm63 = vcmask 458112
    %64 = vst.msk [vmem:[#allocation0] sm:$0x1] %vm63, %v62
    %s65 = scalar_lea.vmem %s0, 5
    %v66 = vld [vmem:[%s65] sm:$0x1]
    %67 = vrot.lane.b32.xlu0 %v66, 40
    %v68 = vpop.permute.xlu0 %67
    %vm69 = vcmask 392512
    %70 = vst.msk [vmem:[#allocation0] sm:$0x1] %vm69, %v68
    %s71 = scalar_lea.vmem %s0, 4
    %v72 = vld [vmem:[%s71] sm:$0x1]
    %73 = vrot.lane.b32.xlu0 %v72, 32
    %v74 = vpop.permute.xlu0 %73
    %vm75 = vcmask 326912
    %76 = vst.msk [vmem:[#allocation0] sm:$0x1] %vm75, %v74
    %s77 = scalar_lea.vmem %s0, 3
    %v78 = vld [vmem:[%s77] sm:$0x1]
    %79 = vrot.lane.b32.xlu0 %v78, 24
    %v80 = vpop.permute.xlu0 %79
    %vm81 = vcmask 261312
    %82 = vst.msk [vmem:[#allocation0] sm:$0x1] %vm81, %v80
    %s83 = scalar_lea.vmem %s0, 2
    %v84 = vld [vmem:[%s83] sm:$0x1]
    %85 = vrot.lane.b32.xlu0 %v84, 16
    %v86 = vpop.permute.xlu0 %85
    %vm87 = vcmask 195712
    %88 = vst.msk [vmem:[#allocation0] sm:$0x1] %vm87, %v86
    %s89 = scalar_lea.vmem %s0, 1
    %v90 = vld [vmem:[%s89] sm:$0x1]
    %91 = vrot.lane.b32.xlu0 %v90, 8
    %v92 = vpop.permute.xlu0 %91
    %vm93 = vcmask 130112
    %94 = vst.msk [vmem:[#allocation0] sm:$0x1] %vm93, %v92
    %s96 = sshllo.u32 0, 1
    %v98 = vld [vmem:[#allocation0] sm:%s96]
    %s99 = sshllo.u32 0, 1
    %100 = vst [vmem:[%s1] sm:%s99] %v98

// kernel: dilconv_forward.3
$region0: #{dilconv_forward.3}
  #allocation0 [shape = 'u32[]', space=smem, size = 0x4, offset = 0x4, fixed_abs, tag = 'smem constant byte address 0x4 - core index']
  #allocation1 [shape = 'u32[144,128]{1,0:T(1,128)}', space=vmem, size = 0x12000, scoped, tag = 'internal scratch']
  %s0 = inlined_call_operand.vmem [shape: f32[2,16,128], index: 0, kind: input, shape index: {}, may-alias: {0,3}]
  %s1 = inlined_call_operand.vmem [shape: f32[1,128], index: 1, kind: input, shape index: {}]
  %s2 = inlined_call_operand.vmem [shape: f32[1,128], index: 2, kind: input, shape index: {}]
  %s3 = inlined_call_operand.vmem [shape: f32[2,16,128], index: 3, kind: output, shape index: {}, may-alias: {0,3}]
  %s4 = sld [smem:[#allocation0]]
  $region45: #{dilconv_forward.3} parent=0
    _
  %s6 = ssub.s32 1, %s4
  %s7 = scalar_select 0, %s6, %s4
  loop: start=0, step=1, limit=6
  $region2: #{dilconv_forward.3} parent=0 // loop_pre_header
    _
  $region3: #{dilconv_forward.3} parent=0 // loop_header
    %s9 = sphi 0, %s13
    %p10 = scmp.ge.s32.totalorder %s9, 6
    %s16 = sphi 0, %s28
    %s17 = sphi 0, %s24
    %s18 = sphi 0, %s16
    %s19 = sphi 0, %s17
    %s20 = sphi 0, %s18
    %s21 = sphi 0, %s19
    %s33 = sphi 0, %s35
    %s36 = sphi 0, %s33
    %s37 = sphi 0, %s36
    %s53 = sphi 0, %s37
    %s57 = sphi 0, %s57
    %s59 = sphi 0, %s57
    %s60 = sphi 0, %s59
    %s74 = sphi 0, %s60
    %s78 = sphi 0, %s78
    %s80 = sphi 0, %s78
    %s81 = sphi 0, %s80
    %s95 = sphi 0, %s81
    %s103 = sphi 0, %s105
    %s106 = sphi 0, %s103
    %s107 = sphi 0, %s106
    %s123 = sphi 0, %s107
  $region4: #{dilconv_forward.3} parent=0 // loop_header_branch
    %12 = sbr.rel (%p10) target = $region8
  $region5: #{dilconv_forward.3} parent=0 // loop_body
    %s14 = ssub.s32 %s9, 1
    %s15 = ssub.s32 %s9, 2
    %s22 = sadd.s32 1, %s17
    %p23 = scmp.ge.s32.totalorder %s22, 2
    %s24 = scalar_select %p23, 0, %s22
    %s25 = sadd.s32 1, %s16
    %s26 = scalar_select %p23, %s25, %s16
    %p27 = scmp.ge.s32.totalorder %s26, 2
    %s28 = scalar_select %p27, 0, %s26
    %s29 = ssub.s32 %s16, %s28
    %s30 = ssub.s32 %s17, %s24
    %s31 = sor.u32 %s29, %s30
    %p32 = scmp.eq.s32.totalorder %s31, 0
    %s34 = sadd.s32 %s33, 1
    %s35 = scalar_select %p32, %s33, %s34
    %p38 = pneg %p32
    %p39 = scmp.eq.s32.totalorder %s9, 3
    %p40 = por %p38, %p39
    %p41 = scmp.ne.s32.totalorder %s33, %s36
    %p42 = scmp.eq.s32.totalorder %s9, 0
    %p43 = por %p41, %p42
    %p44 = scmp.ne.s32.totalorder %s33, %s36
    %p45 = scmp.eq.s32.totalorder %s14, 3
    %p46 = por %p44, %p45
    %p47 = scmp.ne.s32.totalorder %s36, %s37
    %p48 = scmp.eq.s32.totalorder %s14, 0
    %p49 = por %p47, %p48
    %p50 = scmp.ne.s32.totalorder %s36, %s37
    %p51 = scmp.eq.s32.totalorder %s15, 3
    %p52 = por %p50, %p51
    %p54 = scmp.ne.s32.totalorder %s37, %s53
    %p55 = scmp.eq.s32.totalorder %s15, 0
    %p56 = por %p54, %p55
    %s58 = sadd.s32 %s57, 1
    %p61 = scmp.eq.s32.totalorder %s9, 3
    %p62 = scmp.ne.s32.totalorder %s57, %s59
    %p63 = scmp.eq.s32.totalorder %s9, 0
    %p64 = por %p62, %p63
    %p65 = scmp.ne.s32.totalorder %s57, %s59
    %p66 = scmp.eq.s32.totalorder %s14, 3
    %p67 = por %p65, %p66
    %p68 = scmp.ne.s32.totalorder %s59, %s60
    %p69 = scmp.eq.s32.totalorder %s14, 0
    %p70 = por %p68, %p69
    %p71 = scmp.ne.s32.totalorder %s59, %s60
    %p72 = scmp.eq.s32.totalorder %s15, 3
    %p73 = por %p71, %p72
    %p75 = scmp.ne.s32.totalorder %s60, %s74
    %p76 = scmp.eq.s32.totalorder %s15, 0
    %p77 = por %p75, %p76
    %s79 = sadd.s32 %s78, 1
    %p82 = scmp.eq.s32.totalorder %s9, 3
    %p83 = scmp.ne.s32.totalorder %s78, %s80
    %p84 = scmp.eq.s32.totalorder %s9, 0
    %p85 = por %p83, %p84
    %p86 = scmp.ne.s32.totalorder %s78, %s80
    %p87 = scmp.eq.s32.totalorder %s14, 3
    %p88 = por %p86, %p87
    %p89 = scmp.ne.s32.totalorder %s80, %s81
    %p90 = scmp.eq.s32.totalorder %s14, 0
    %p91 = por %p89, %p90
    %p92 = scmp.ne.s32.totalorder %s80, %s81
    %p93 = scmp.eq.s32.totalorder %s15, 3
    %p94 = por %p92, %p93
    %p96 = scmp.ne.s32.totalorder %s81, %s95
    %p97 = scmp.eq.s32.totalorder %s15, 0
    %p98 = por %p96, %p97
    %s99 = ssub.s32 %s16, %s28
    %s100 = ssub.s32 %s17, %s24
    %s101 = sor.u32 %s99, %s100
    %p102 = scmp.eq.s32.totalorder %s101, 0
    %s104 = sadd.s32 %s103, 1
    %s105 = scalar_select %p102, %s103, %s104
    %p108 = pneg %p102
    %p109 = scmp.eq.s32.totalorder %s9, 3
    %p110 = por %p108, %p109
    %p111 = scmp.ne.s32.totalorder %s103, %s106
    %p112 = scmp.eq.s32.totalorder %s9, 0
    %p113 = por %p111, %p112
    %p114 = scmp.ne.s32.totalorder %s103, %s106
    %p115 = scmp.eq.s32.totalorder %s14, 3
    %p116 = por %p114, %p115
    %p117 = scmp.ne.s32.totalorder %s106, %s107
    %p118 = scmp.eq.s32.totalorder %s14, 0
    %p119 = por %p117, %p118
    %p120 = scmp.ne.s32.totalorder %s106, %s107
    %p121 = scmp.eq.s32.totalorder %s15, 3
    %p122 = por %p120, %p121
    %p124 = scmp.ne.s32.totalorder %s107, %s123
    %p125 = scmp.eq.s32.totalorder %s15, 0
    %p126 = por %p124, %p125
    %p127 = scmp.le.s32.totalorder 1, %s9
    %p128 = scmp.lt.s32.totalorder %s9, 5
    %p129 = pnand %p127, %p128
    %p130 = pneg %p129
    // Predicated region
    $region9: #{dilconv_forward.3} parent=5 // pred_check
      _
    $region10: #{dilconv_forward.3} parent=5 // pred_check_branch
      %132 = sbr.rel (%p129) target = $region12
    $region11: #{dilconv_forward.3} parent=5 // pred_region
      %s133 = ssub.s32 %s9, 1
      // Predicated region
      $region13: #{dilconv_forward.3} parent=11 // pred_check
        %p134 = pneg %p70
      $region14: #{dilconv_forward.3} parent=11 // pred_check_branch
        %136 = sbr.rel (%p134) target = $region16
      $region15: #{dilconv_forward.3} parent=11 // pred_region
        _
      $region16: #{dilconv_forward.3} parent=11 // pred_fallthru
        _
      // Predicated region
      $region17: #{dilconv_forward.3} parent=11 // pred_check
        %p137 = pneg %p91
      $region18: #{dilconv_forward.3} parent=11 // pred_check_branch
        %139 = sbr.rel (%p137) target = $region20
      $region19: #{dilconv_forward.3} parent=11 // pred_region
        _
      $region20: #{dilconv_forward.3} parent=11 // pred_fallthru
        _
    $region12: #{dilconv_forward.3} parent=5 // pred_fallthru
      _
    %p140 = scmp.lt.s32.totalorder %s9, 4
    // Predicated region
    $region21: #{dilconv_forward.3} parent=5 // pred_check
      %p141 = pneg %p140
    $region22: #{dilconv_forward.3} parent=5 // pred_check_branch
      %143 = sbr.rel (%p141) target = $region24
    $region23: #{dilconv_forward.3} parent=5 // pred_region
      // Predicated region
      $region25: #{dilconv_forward.3} parent=23 // pred_check
        %p144 = pneg %p43
      $region26: #{dilconv_forward.3} parent=23 // pred_check_branch
        %146 = sbr.rel (%p144) target = $region28
      $region27: #{dilconv_forward.3} parent=23 // pred_region
        %p147 = scmp.lt.s32.totalorder %s16, 1
        %s148 = scalar_select %p147, %s16, 1
        %p149 = scmp.lt.s32.totalorder %s17, 1
        %s150 = scalar_select %p149, %s17, 1
        %s151 = smul.addr %s148, 2
        %s152 = sadd.s32 %s150, %s151
        %s153 = smul.addr %s152, 8
        %s154 = scalar_lea.vmem %s0, %s153
      $region28: #{dilconv_forward.3} parent=23 // pred_fallthru
        _
    $region24: #{dilconv_forward.3} parent=5 // pred_fallthru
      _
    %p155 = scmp.le.s32.totalorder 1, %s9
    %p156 = scmp.lt.s32.totalorder %s9, 5
    %p157 = pnand %p155, %p156
    %p158 = pneg %p157
    // Predicated region
    $region29: #{dilconv_forward.3} parent=5 // pred_check
      _
    $region30: #{dilconv_forward.3} parent=5 // pred_check_branch
      %160 = sbr.rel (%p157) target = $region32
    $region31: #{dilconv_forward.3} parent=5 // pred_region
      %s161 = ssub.s32 %s9, 1
      %p162 = scmp.lt.s32.totalorder %s18, 1
      %s163 = scalar_select %p162, %s18, 1
      %p164 = scmp.lt.s32.totalorder %s19, 1
      %s165 = scalar_select %p164, %s19, 1
      %s166 = smul.addr %s163, 2
      %s167 = sadd.s32 %s165, %s166
      %s168 = smul.addr %s167, 8
      %s169 = scalar_lea.vmem %s0, %s168
      %p170 = pneg %p49
      %p171 = pneg %p46
      %p172 = pneg %p70
      %p173 = pneg %p67
      %p174 = pneg %p91
      %p175 = pneg %p88
      %p176 = pneg %p119
      %p177 = pneg %p116
      %p178 = scmp.lt.s32.totalorder %s18, 1
      %s179 = scalar_select %p178, %s18, 1
      %p180 = scmp.lt.s32.totalorder %s19, 1
      %s181 = scalar_select %p180, %s19, 1
      %s182 = smul.addr %s179, 2
      %s183 = sadd.s32 %s181, %s182
      %s184 = smul.addr %s183, 8
      %s185 = scalar_lea.vmem %s3, %s184
      %p186 = scmp.lt.s32.totalorder %s18, 1
      %s187 = scalar_select %p186, %s18, 1
      %p188 = scmp.lt.s32.totalorder %s19, 1
      %s189 = scalar_select %p188, %s19, 1
      %s190 = smul.addr %s187, 2
      %s191 = sadd.s32 %s189, %s190
      %s192 = smul.addr %s191, 8
      %s193 = scalar_lea.vmem %s0, %s192
      %p194 = scmp.lt.s32.totalorder %s18, 1
      %s195 = scalar_select %p194, %s18, 1
      %p196 = scmp.lt.s32.totalorder %s19, 1
      %s197 = scalar_select %p196, %s19, 1
      %s198 = smul.addr %s195, 2
      %s199 = sadd.s32 %s197, %s198
      %s200 = smul.addr %s199, 8
      %s201 = scalar_lea.vmem %s3, %s200
      %v202 = vld [vmem:[%s193] sm:$0xff]
      %v203 = vld [vmem:[%s1] sm:$0x1]
      %v205 = vlaneseq
      %v206 = vshrl.u32 %v205, 7
      %v207 = vsub.s32 0, %v206
      %v208 = vrot.slane %v203, %v207
      %v210 = vmul.f32 %v202, %v208
      %v211 = vld [vmem:[%s2] sm:$0x1]
      %v213 = vlaneseq
      %v214 = vshrl.u32 %v213, 7
      %v215 = vsub.s32 0, %v214
      %v216 = vrot.slane %v211, %v215
      %v218 = vadd.f32 %v210, %v216
      %219 = vst [vmem:[%s201] sm:$0xff] %v218
      %p220 = scmp.lt.s32.totalorder %s18, 1
      %s221 = scalar_select %p220, %s18, 1
      %p222 = scmp.lt.s32.totalorder %s19, 1
      %s223 = scalar_select %p222, %s19, 1
      %s224 = smul.addr %s221, 2
      %s225 = sadd.s32 %s223, %s224
      %s226 = smul.addr %s225, 8
      %s227 = scalar_lea.vmem %s3, %s226
      // Predicated region
      $region33: #{dilconv_forward.3} parent=31 // pred_check
        %p228 = pneg %p116
      $region34: #{dilconv_forward.3} parent=31 // pred_check_branch
        %230 = sbr.rel (%p228) target = $region36
      $region35: #{dilconv_forward.3} parent=31 // pred_region
        _
      $region36: #{dilconv_forward.3} parent=31 // pred_fallthru
        _
    $region32: #{dilconv_forward.3} parent=5 // pred_fallthru
      _
    %p231 = scmp.le.s32.totalorder 2, %s9
    // Predicated region
    $region37: #{dilconv_forward.3} parent=5 // pred_check
      %p232 = pneg %p231
    $region38: #{dilconv_forward.3} parent=5 // pred_check_branch
      %234 = sbr.rel (%p232) target = $region40
    $region39: #{dilconv_forward.3} parent=5 // pred_region
      %s235 = ssub.s32 %s9, 2
      // Predicated region
      $region41: #{dilconv_forward.3} parent=39 // pred_check
        %p236 = pneg %p122
      $region42: #{dilconv_forward.3} parent=39 // pred_check_branch
        %238 = sbr.rel (%p236) target = $region44
      $region43: #{dilconv_forward.3} parent=39 // pred_region
        %p239 = scmp.lt.s32.totalorder %s20, 1
        %s240 = scalar_select %p239, %s20, 1
        %p241 = scmp.lt.s32.totalorder %s21, 1
        %s242 = scalar_select %p241, %s21, 1
        %s243 = smul.addr %s240, 2
        %s244 = sadd.s32 %s242, %s243
        %s245 = smul.addr %s244, 8
        %s246 = scalar_lea.vmem %s3, %s245
      $region44: #{dilconv_forward.3} parent=39 // pred_fallthru
        _
    $region40: #{dilconv_forward.3} parent=5 // pred_fallthru
      _
  $region6: #{dilconv_forward.3} parent=0 // loop_footer
    %s13 = sadd.s32 1, %s9
  $region7: #{dilconv_forward.3} parent=0 // loop_footer_branch
    %8 = sbr.rel target = $region3
  $region8: #{dilconv_forward.3} parent=0 // loop_exit
    _

// kernel: dilconv_forward.2
$region0: #{dilconv_forward.2}
  #allocation0 [shape = 'u32[]', space=smem, size = 0x4, offset = 0x4, fixed_abs, tag = 'smem constant byte address 0x4 - core index']
  #allocation1 [shape = 'u32[144,128]{1,0:T(1,128)}', space=vmem, size = 0x12000, scoped, tag = 'internal scratch']
  %s0 = inlined_call_operand.vmem [shape: f32[2,20,80], index: 0, kind: input, shape index: {}]
  %s1 = inlined_call_operand.vmem [shape: f32[9,64], index: 1, kind: input, shape index: {}]
  %s2 = inlined_call_operand.vmem [shape: f32[64,128], index: 2, kind: input, shape index: {}]
  %s3 = inlined_call_operand.vmem [shape: f32[2,16,128], index: 3, kind: output, shape index: {0}]
  %s4 = inlined_call_operand.vmem [shape: f32[2,2,2,128], index: 4, kind: output, shape index: {1}]
  %5 = xla_tuple %s3, %s4
  %s6 = sld [smem:[#allocation0]]
  $region53: #{dilconv_forward.2} parent=0
    _
  %s8 = ssub.s32 1, %s6
  %s9 = scalar_select 0, %s8, %s6
  loop: start=0, step=1, limit=6
  $region2: #{dilconv_forward.2} parent=0 // loop_pre_header
    _
  $region3: #{dilconv_forward.2} parent=0 // loop_header
    %s11 = sphi 0, %s15
    %p12 = scmp.ge.s32.totalorder %s11, 6
    %s18 = sphi 0, %s30
    %s19 = sphi 0, %s26
    %s20 = sphi 0, %s18
    %s21 = sphi 0, %s19
    %s22 = sphi 0, %s20
    %s23 = sphi 0, %s21
    %s33 = sphi 0, %s35
    %s36 = sphi 0, %s33
    %s37 = sphi 0, %s36
    %s53 = sphi 0, %s37
    %s57 = sphi 0, %s57
    %s59 = sphi 0, %s57
    %s60 = sphi 0, %s59
    %s74 = sphi 0, %s60
    %s78 = sphi 0, %s78
    %s80 = sphi 0, %s78
    %s81 = sphi 0, %s80
    %s95 = sphi 0, %s81
    %s103 = sphi 0, %s105
    %s106 = sphi 0, %s103
    %s107 = sphi 0, %s106
    %s123 = sphi 0, %s107
    %s131 = sphi 0, %s133
    %s134 = sphi 0, %s131
    %s135 = sphi 0, %s134
    %s151 = sphi 0, %s135
  $region4: #{dilconv_forward.2} parent=0 // loop_header_branch
    %14 = sbr.rel (%p12) target = $region8
  $region5: #{dilconv_forward.2} parent=0 // loop_body
    %s16 = ssub.s32 %s11, 1
    %s17 = ssub.s32 %s11, 2
    %s24 = sadd.s32 1, %s19
    %p25 = scmp.ge.s32.totalorder %s24, 2
    %s26 = scalar_select %p25, 0, %s24
    %s27 = sadd.s32 1, %s18
    %s28 = scalar_select %p25, %s27, %s18
    %p29 = scmp.ge.s32.totalorder %s28, 2
    %s30 = scalar_select %p29, 0, %s28
    %s31 = ssub.s32 %s18, %s30
    %p32 = scmp.eq.s32.totalorder %s31, 0
    %s34 = sadd.s32 %s33, 1
    %s35 = scalar_select %p32, %s33, %s34
    %p38 = pneg %p32
    %p39 = scmp.eq.s32.totalorder %s11, 3
    %p40 = por %p38, %p39
    %p41 = scmp.ne.s32.totalorder %s33, %s36
    %p42 = scmp.eq.s32.totalorder %s11, 0
    %p43 = por %p41, %p42
    %p44 = scmp.ne.s32.totalorder %s33, %s36
    %p45 = scmp.eq.s32.totalorder %s16, 3
    %p46 = por %p44, %p45
    %p47 = scmp.ne.s32.totalorder %s36, %s37
    %p48 = scmp.eq.s32.totalorder %s16, 0
    %p49 = por %p47, %p48
    %p50 = scmp.ne.s32.totalorder %s36, %s37
    %p51 = scmp.eq.s32.totalorder %s17, 3
    %p52 = por %p50, %p51
    %p54 = scmp.ne.s32.totalorder %s37, %s53
    %p55 = scmp.eq.s32.totalorder %s17, 0
    %p56 = por %p54, %p55
    %s58 = sadd.s32 %s57, 1
    %p61 = scmp.eq.s32.totalorder %s11, 3
    %p62 = scmp.ne.s32.totalorder %s57, %s59
    %p63 = scmp.eq.s32.totalorder %s11, 0
    %p64 = por %p62, %p63
    %p65 = scmp.ne.s32.totalorder %s57, %s59
    %p66 = scmp.eq.s32.totalorder %s16, 3
    %p67 = por %p65, %p66
    %p68 = scmp.ne.s32.totalorder %s59, %s60
    %p69 = scmp.eq.s32.totalorder %s16, 0
    %p70 = por %p68, %p69
    %p71 = scmp.ne.s32.totalorder %s59, %s60
    %p72 = scmp.eq.s32.totalorder %s17, 3
    %p73 = por %p71, %p72
    %p75 = scmp.ne.s32.totalorder %s60, %s74
    %p76 = scmp.eq.s32.totalorder %s17, 0
    %p77 = por %p75, %p76
    %s79 = sadd.s32 %s78, 1
    %p82 = scmp.eq.s32.totalorder %s11, 3
    %p83 = scmp.ne.s32.totalorder %s78, %s80
    %p84 = scmp.eq.s32.totalorder %s11, 0
    %p85 = por %p83, %p84
    %p86 = scmp.ne.s32.totalorder %s78, %s80
    %p87 = scmp.eq.s32.totalorder %s16, 3
    %p88 = por %p86, %p87
    %p89 = scmp.ne.s32.totalorder %s80, %s81
    %p90 = scmp.eq.s32.totalorder %s16, 0
    %p91 = por %p89, %p90
    %p92 = scmp.ne.s32.totalorder %s80, %s81
    %p93 = scmp.eq.s32.totalorder %s17, 3
    %p94 = por %p92, %p93
    %p96 = scmp.ne.s32.totalorder %s81, %s95
    %p97 = scmp.eq.s32.totalorder %s17, 0
    %p98 = por %p96, %p97
    %s99 = ssub.s32 %s18, %s30
    %s100 = ssub.s32 %s19, %s26
    %s101 = sor.u32 %s99, %s100
    %p102 = scmp.eq.s32.totalorder %s101, 0
    %s104 = sadd.s32 %s103, 1
    %s105 = scalar_select %p102, %s103, %s104
    %p108 = pneg %p102
    %p109 = scmp.eq.s32.totalorder %s11, 3
    %p110 = por %p108, %p109
    %p111 = scmp.ne.s32.totalorder %s103, %s106
    %p112 = scmp.eq.s32.totalorder %s11, 0
    %p113 = por %p111, %p112
    %p114 = scmp.ne.s32.totalorder %s103, %s106
    %p115 = scmp.eq.s32.totalorder %s16, 3
    %p116 = por %p114, %p115
    %p117 = scmp.ne.s32.totalorder %s106, %s107
    %p118 = scmp.eq.s32.totalorder %s16, 0
    %p119 = por %p117, %p118
    %p120 = scmp.ne.s32.totalorder %s106, %s107
    %p121 = scmp.eq.s32.totalorder %s17, 3
    %p122 = por %p120, %p121
    %p124 = scmp.ne.s32.totalorder %s107, %s123
    %p125 = scmp.eq.s32.totalorder %s17, 0
    %p126 = por %p124, %p125
    %s127 = ssub.s32 %s18, %s30
    %s128 = ssub.s32 %s19, %s26
    %s129 = sor.u32 %s127, %s128
    %p130 = scmp.eq.s32.totalorder %s129, 0
    %s132 = sadd.s32 %s131, 1
    %s133 = scalar_select %p130, %s131, %s132
    %p136 = pneg %p130
    %p137 = scmp.eq.s32.totalorder %s11, 3
    %p138 = por %p136, %p137
    %p139 = scmp.ne.s32.totalorder %s131, %s134
    %p140 = scmp.eq.s32.totalorder %s11, 0
    %p141 = por %p139, %p140
    %p142 = scmp.ne.s32.totalorder %s131, %s134
    %p143 = scmp.eq.s32.totalorder %s16, 3
    %p144 = por %p142, %p143
    %p145 = scmp.ne.s32.totalorder %s134, %s135
    %p146 = scmp.eq.s32.totalorder %s16, 0
    %p147 = por %p145, %p146
    %p148 = scmp.ne.s32.totalorder %s134, %s135
    %p149 = scmp.eq.s32.totalorder %s17, 3
    %p150 = por %p148, %p149
    %p152 = scmp.ne.s32.totalorder %s135, %s151
    %p153 = scmp.eq.s32.totalorder %s17, 0
    %p154 = por %p152, %p153
    %p155 = scmp.le.s32.totalorder 1, %s11
    %p156 = scmp.lt.s32.totalorder %s11, 5
    %p157 = pnand %p155, %p156
    %p158 = pneg %p157
    // Predicated region
    $region9: #{dilconv_forward.2} parent=5 // pred_check
      _
    $region10: #{dilconv_forward.2} parent=5 // pred_check_branch
      %160 = sbr.rel (%p157) target = $region12
    $region11: #{dilconv_forward.2} parent=5 // pred_region
      %s161 = ssub.s32 %s11, 1
      // Predicated region
      $region13: #{dilconv_forward.2} parent=11 // pred_check
        %p162 = pneg %p70
      $region14: #{dilconv_forward.2} parent=11 // pred_check_branch
        %164 = sbr.rel (%p162) target = $region16
      $region15: #{dilconv_forward.2} parent=11 // pred_region
        _
      $region16: #{dilconv_forward.2} parent=11 // pred_fallthru
        _
      // Predicated region
      $region17: #{dilconv_forward.2} parent=11 // pred_check
        %p165 = pneg %p91
      $region18: #{dilconv_forward.2} parent=11 // pred_check_branch
        %167 = sbr.rel (%p165) target = $region20
      $region19: #{dilconv_forward.2} parent=11 // pred_region
        _
      $region20: #{dilconv_forward.2} parent=11 // pred_fallthru
        _
    $region12: #{dilconv_forward.2} parent=5 // pred_fallthru
      _
    %p168 = scmp.lt.s32.totalorder %s11, 4
    // Predicated region
    $region21: #{dilconv_forward.2} parent=5 // pred_check
      %p169 = pneg %p168
    $region22: #{dilconv_forward.2} parent=5 // pred_check_branch
      %171 = sbr.rel (%p169) target = $region24
    $region23: #{dilconv_forward.2} parent=5 // pred_region
      // Predicated region
      $region25: #{dilconv_forward.2} parent=23 // pred_check
        %p172 = pneg %p43
      $region26: #{dilconv_forward.2} parent=23 // pred_check_branch
        %174 = sbr.rel (%p172) target = $region28
      $region27: #{dilconv_forward.2} parent=23 // pred_region
        %p175 = scmp.lt.s32.totalorder %s18, 1
        %s176 = scalar_select %p175, %s18, 1
        %s177 = smul.addr %s176, 3
        %s178 = smul.addr %s177, 8
        %s179 = scalar_lea.vmem %s0, %s178
      $region28: #{dilconv_forward.2} parent=23 // pred_fallthru
        _
    $region24: #{dilconv_forward.2} parent=5 // pred_fallthru
      _
    %p180 = scmp.le.s32.totalorder 1, %s11
    %p181 = scmp.lt.s32.totalorder %s11, 5
    %p182 = pnand %p180, %p181
    %p183 = pneg %p182
    // Predicated region
    $region29: #{dilconv_forward.2} parent=5 // pred_check
      _
    $region30: #{dilconv_forward.2} parent=5 // pred_check_branch
      %185 = sbr.rel (%p182) target = $region32
    $region31: #{dilconv_forward.2} parent=5 // pred_region
      %s186 = ssub.s32 %s11, 1
      %p187 = scmp.lt.s32.totalorder %s20, 1
      %s188 = scalar_select %p187, %s20, 1
      %s189 = smul.addr %s188, 3
      %s190 = smul.addr %s189, 8
      %s191 = scalar_lea.vmem %s0, %s190
      %p192 = pneg %p49
      %p193 = pneg %p46
      %p194 = pneg %p70
      %p195 = pneg %p67
      %p196 = pneg %p91
      %p197 = pneg %p88
      %p198 = pneg %p119
      %p199 = pneg %p116
      %p200 = scmp.lt.s32.totalorder %s20, 1
      %s201 = scalar_select %p200, %s20, 1
      %p202 = scmp.lt.s32.totalorder %s21, 1
      %s203 = scalar_select %p202, %s21, 1
      %s204 = smul.addr %s201, 2
      %s205 = sadd.s32 %s203, %s204
      %s206 = smul.addr %s205, 8
      %s207 = scalar_lea.vmem %s3, %s206
      %p208 = pneg %p147
      %p209 = pneg %p144
      %p210 = scmp.lt.s32.totalorder %s20, 1
      %s211 = scalar_select %p210, %s20, 1
      %p212 = scmp.lt.s32.totalorder %s21, 1
      %s213 = scalar_select %p212, %s21, 1
      %s214 = smul.addr %s211, 2
      %s215 = sadd.s32 %s213, %s214
      %s216 = smul.addr %s215, 2
      %s217 = scalar_lea.vmem %s4, %s216
      %p218 = scmp.lt.s32.totalorder %s20, 1
      %s219 = scalar_select %p218, %s20, 1
      %s220 = smul.addr %s219, 3
      %s221 = smul.addr %s220, 8
      %s222 = scalar_lea.vmem %s0, %s221
      %p223 = scmp.lt.s32.totalorder %s20, 1
      %s224 = scalar_select %p223, %s20, 1
      %p225 = scmp.lt.s32.totalorder %s21, 1
      %s226 = scalar_select %p225, %s21, 1
      %s227 = smul.addr %s224, 2
      %s228 = sadd.s32 %s226, %s227
      %s229 = smul.addr %s228, 8
      %s230 = scalar_lea.vmem %s3, %s229
      %p231 = scmp.lt.s32.totalorder %s20, 1
      %s232 = scalar_select %p231, %s20, 1
      %p233 = scmp.lt.s32.totalorder %s21, 1
      %s234 = scalar_select %p233, %s21, 1
      %s235 = smul.addr %s232, 2
      %s236 = sadd.s32 %s234, %s235
      %s237 = smul.addr %s236, 2
      %s238 = scalar_lea.vmem %s4, %s237
      %s239 = smul.u32 %s21, 8
      %s240 = scalar_lea.vmem %s222, %s239
      %v241 = vld [vmem:[%s240] sm:$0xff]
      %v242 = vld [vmem:[%s240 + $0x8] sm:$0xf]
      %v243 = vmax.f32 %v241, 0.0
      %v244 = vmax.f32 %v242, 0.0
      %v245 = vld [vmem:[%s1] sm:$0x1]
      %v246 = vlaneseq
      %v247 = vshrl.u32 %v246, 7
      %v248 = vsub.s32 0, %v247
      %v249 = vrot.slane %v245, %v248
      %v250 = vmul.f32 %v243, %v249
      %v251 = vld [vmem:[%s1 + $0x1] sm:$0x1]
      %v252 = vlaneseq
      %v253 = vshrl.u32 %v252, 7
      %v254 = vsub.s32 0, %v253
      %v255 = vrot.slane %v251, %v254
      %257 = vrot.lane.b32.xlu0 %v255, 8
      %v258 = vpop.permute.xlu0 %257
      %v260 = vmul.f32 %v243, %v258
      %262 = vrot.lane.b32.xlu0 %v260, 120
      %v263 = vpop.permute.xlu0 %262
      %v265 = vadd.f32 %v250, %v263
      %v266 = vld [vmem:[%s1 + $0x2] sm:$0x1]
      %v267 = vlaneseq
      %v268 = vshrl.u32 %v267, 7
      %v269 = vsub.s32 0, %v268
      %v270 = vrot.slane %v266, %v269
      %272 = vrot.lane.b32.xlu0 %v270, 16
      %v273 = vpop.permute.xlu0 %272
      %v275 = vmul.f32 %v243, %v273
      %277 = vrot.lane.b32.xlu0 %v275, 112
      %v278 = vpop.permute.xlu0 %277
      %v280 = vadd.f32 %v265, %v278
      %v281 = vld [vmem:[%s1 + $0x3] sm:$0x1]
      %v282 = vlaneseq
      %v283 = vshrl.u32 %v282, 7
      %v284 = vsub.s32 0, %v283
      %v285 = vrot.slane %v281, %v284
      %v286 = vmul.f32 %v243, %v285
      %v287 = vmul.f32 %v244, %v285
      %vm290 = vcmask 1045504
      %v291 = vrot.slane %v286, 2
      %v292 = vrot.slane %v287, 2
      %v293 = vsel %vm290, %v291, %v292
      %v295 = vadd.f32 %v280, %v293
      %v296 = vld [vmem:[%s1 + $0x4] sm:$0x1]
      %v297 = vlaneseq
      %v298 = vshrl.u32 %v297, 7
      %v299 = vsub.s32 0, %v298
      %v300 = vrot.slane %v296, %v299
      %302 = vrot.lane.b32.xlu0 %v300, 8
      %v303 = vpop.permute.xlu0 %302
      %v305 = vmul.f32 %v243, %v303
      %v306 = vmul.f32 %v244, %v303
      %v309 = vrot.slane %v305, 2
      %v310 = vrot.slane %v306, 2
      %v311 = vsel %vm290, %v309, %v310
      %312 = vrot.lane.b32.xlu0 %v311, 120
      %v313 = vpop.permute.xlu0 %312
      %v315 = vadd.f32 %v295, %v313
      %v316 = vld [vmem:[%s1 + $0x5] sm:$0x1]
      %v317 = vlaneseq
      %v318 = vshrl.u32 %v317, 7
      %v319 = vsub.s32 0, %v318
      %v320 = vrot.slane %v316, %v319
      %322 = vrot.lane.b32.xlu0 %v320, 16
      %v323 = vpop.permute.xlu0 %322
      %v325 = vmul.f32 %v243, %v323
      %v326 = vmul.f32 %v244, %v323
      %v329 = vrot.slane %v325, 2
      %v330 = vrot.slane %v326, 2
      %v331 = vsel %vm290, %v329, %v330
      %332 = vrot.lane.b32.xlu0 %v331, 112
      %v333 = vpop.permute.xlu0 %332
      %v335 = vadd.f32 %v315, %v333
      %v336 = vld [vmem:[%s1 + $0x6] sm:$0x1]
      %v337 = vlaneseq
      %v338 = vshrl.u32 %v337, 7
      %v339 = vsub.s32 0, %v338
      %v340 = vrot.slane %v336, %v339
      %v341 = vmul.f32 %v243, %v340
      %v342 = vmul.f32 %v244, %v340
      %vm345 = vcmask 1043456
      %v346 = vrot.slane %v341, 4
      %v347 = vrot.slane %v342, 4
      %v348 = vsel %vm345, %v346, %v347
      %v350 = vadd.f32 %v335, %v348
      %v351 = vld [vmem:[%s1 + $0x7] sm:$0x1]
      %v352 = vlaneseq
      %v353 = vshrl.u32 %v352, 7
      %v354 = vsub.s32 0, %v353
      %v355 = vrot.slane %v351, %v354
      %357 = vrot.lane.b32.xlu0 %v355, 8
      %v358 = vpop.permute.xlu0 %357
      %v360 = vmul.f32 %v243, %v358
      %v361 = vmul.f32 %v244, %v358
      %v364 = vrot.slane %v360, 4
      %v365 = vrot.slane %v361, 4
      %v366 = vsel %vm345, %v364, %v365
      %367 = vrot.lane.b32.xlu0 %v366, 120
      %v368 = vpop.permute.xlu0 %367
      %v370 = vadd.f32 %v350, %v368
      %v371 = vld [vmem:[%s1 + $0x8] sm:$0x1]
      %v372 = vlaneseq
      %v373 = vshrl.u32 %v372, 7
      %v374 = vsub.s32 0, %v373
      %v375 = vrot.slane %v371, %v374
      %377 = vrot.lane.b32.xlu0 %v375, 16
      %v378 = vpop.permute.xlu0 %377
      %v380 = vmul.f32 %v243, %v378
      %v381 = vmul.f32 %v244, %v378
      %v384 = vrot.slane %v380, 4
      %v385 = vrot.slane %v381, 4
      %v386 = vsel %vm345, %v384, %v385
      %387 = vrot.lane.b32.xlu0 %v386, 112
      %v388 = vpop.permute.xlu0 %387
      %v390 = vadd.f32 %v370, %v388
      %v391 = vld [vmem:[%s2] sm:$0xff]
      %v392 = vld [vmem:[%s2 + $0x8] sm:$0xff]
      %v393 = vld [vmem:[%s2 + $0x10] sm:$0xff]
      %v394 = vld [vmem:[%s2 + $0x18] sm:$0xff]
      %v395 = vld [vmem:[%s2 + $0x20] sm:$0xff]
      %v396 = vld [vmem:[%s2 + $0x28] sm:$0xff]
      %v397 = vld [vmem:[%s2 + $0x30] sm:$0xff]
      %v398 = vld [vmem:[%s2 + $0x38] sm:$0xff]
      %vm399 = vcmask 523264
      %v401 = vsel %vm399, %v390, 0
      %403 = vmatprep.subr.mxu0 0.0
      %404 = vmatpush1.msra.mxu0 %v391
      %405 = vmatprep.subr.mxu0 0.0
      %406 = vmatpush1.msra.mxu0 %v392
      %407 = vmatprep.subr.mxu0 0.0
      %408 = vmatpush1.msra.mxu0 %v393
      %409 = vmatprep.subr.mxu0 0.0
      %410 = vmatpush1.msra.mxu0 %v394
      %411 = vmatprep.subr.mxu0 0.0
      %412 = vmatpush1.msra.mxu0 %v395
      %413 = vmatprep.subr.mxu0 0.0
      %414 = vmatpush1.msra.mxu0 %v396
      %415 = vmatprep.subr.mxu0 0.0
      %416 = vmatpush1.msra.mxu0 %v397
      %417 = vmatprep.subr.mxu0 0.0
      %418 = vmatpush1.msra.mxu0 %v398
      %419 = vmatprep.subr.mxu0 0.0
      %420 = vmatpush1.msra.mxu0 0.0
      %421 = vmatprep.subr.mxu0 0.0
      %422 = vmatpush1.msra.mxu0 0.0
      %423 = vmatprep.subr.mxu0 0.0
      %424 = vmatpush1.msra.mxu0 0.0
      %425 = vmatprep.subr.mxu0 0.0
      %426 = vmatpush1.msra.mxu0 0.0
      %427 = vmatprep.subr.mxu0 0.0
      %428 = vmatpush1.msra.mxu0 0.0
      %429 = vmatprep.subr.mxu0 0.0
      %430 = vmatpush1.msra.mxu0 0.0
      %431 = vmatprep.subr.mxu0 0.0
      %432 = vmatpush1.msra.mxu0 0.0
      %433 = vmatprep.subr.mxu0 0.0
      %434 = vmatpush1.msra.mxu0 0.0
      %435 = vmatprep.subr.mxu0 0.0
      %436 = vmatpush1.msra.mxu0 0.0
      %437 = vmatprep.subr.mxu0 0.0
      %438 = vmatpush1.msra.mxu0 0.0
      %439 = vmatprep.subr.mxu0 0.0
      %440 = vmatpush1.msra.mxu0 0.0
      %441 = vmatprep.subr.mxu0 0.0
      %442 = vmatpush1.msra.mxu0 0.0
      %443 = vmatprep.subr.mxu0 0.0
      %444 = vmatpush1.msra.mxu0 0.0
      %445 = vmatprep.subr.mxu0 0.0
      %446 = vmatpush1.msra.mxu0 0.0
      %447 = vmatprep.subr.mxu0 0.0
      %448 = vmatpush1.msra.mxu0 0.0
      %449 = vmatprep.subr.mxu0 0.0
      %450 = vmatpush1.msra.mxu0 0.0
      %451 = vmatprep.subr.mxu0 0.0
      %452 = vmatpush1.msra.mxu0 0.0
      %453 = vmatprep.subr.mxu0 0.0
      %454 = vmatpush1.msra.mxu0 0.0
      %455 = vmatprep.subr.mxu0 0.0
      %456 = vmatpush1.msra.mxu0 0.0
      %457 = vmatprep.subr.mxu0 0.0
      %458 = vmatpush1.msra.mxu0 0.0
      %459 = vmatprep.subr.mxu0 0.0
      %460 = vmatpush1.msra.mxu0 0.0
      %461 = vmatprep.subr.mxu0 0.0
      %462 = vmatpush1.msra.mxu0 0.0
      %463 = vmatprep.subr.mxu0 0.0
      %464 = vmatpush1.msra.mxu0 0.0
      %465 = vmatprep.subr.mxu0 0.0
      %466 = vmatpush1.msra.mxu0 0.0
      %467 = vmatprep.mubr.f32.mxu0 0.0
      %468 = vmatmul.mubr.f32.gmra.mrb[0].mxu0 %v401
      %v469 = vpop.f32.mrb[0].mxu0
      %v470 = vadd.f32 0.0, %v469
      %v471 = vpop.f32.mrb[0].mxu0
      %472 = vdwg.mxu0
      %473 = vst [vmem:[%s230] sm:$0xff] %v470
      %v474 = vrot.slane %v470, 4
      %v475 = vadd.f32 %v470, %v474
      %v476 = vrot.slane %v475, 2
      %v477 = vadd.f32 %v475, %v476
      %v478 = vrot.slane %v477, 1
      %v479 = vadd.f32 %v477, %v478
      %480 = vst [vmem:[%s238] sm:$0x1] %v479
      %v481 = vmul.f32 %v470, %v470
      %v482 = vrot.slane %v481, 4
      %v483 = vadd.f32 %v481, %v482
      %v484 = vrot.slane %v483, 2
      %v485 = vadd.f32 %v483, %v484
      %v486 = vrot.slane %v485, 1
      %v487 = vadd.f32 %v485, %v486
      %488 = vst [vmem:[%s238 + $0x1] sm:$0x1] %v487
      %p489 = scmp.lt.s32.totalorder %s20, 1
      %s490 = scalar_select %p489, %s20, 1
      %p491 = scmp.lt.s32.totalorder %s21, 1
      %s492 = scalar_select %p491, %s21, 1
      %s493 = smul.addr %s490, 2
      %s494 = sadd.s32 %s492, %s493
      %s495 = smul.addr %s494, 8
      %s496 = scalar_lea.vmem %s3, %s495
      %p497 = scmp.lt.s32.totalorder %s20, 1
      %s498 = scalar_select %p497, %s20, 1
      %p499 = scmp.lt.s32.totalorder %s21, 1
      %s500 = scalar_select %p499, %s21, 1
      %s501 = smul.addr %s498, 2
      %s502 = sadd.s32 %s500, %s501
      %s503 = smul.addr %s502, 2
      %s504 = scalar_lea.vmem %s4, %s503
      // Predicated region
      $region33: #{dilconv_forward.2} parent=31 // pred_check
        %p505 = pneg %p116
      $region34: #{dilconv_forward.2} parent=31 // pred_check_branch
        %507 = sbr.rel (%p505) target = $region36
      $region35: #{dilconv_forward.2} parent=31 // pred_region
        _
      $region36: #{dilconv_forward.2} parent=31 // pred_fallthru
        _
      // Predicated region
      $region37: #{dilconv_forward.2} parent=31 // pred_check
        %p508 = pneg %p144
      $region38: #{dilconv_forward.2} parent=31 // pred_check_branch
        %510 = sbr.rel (%p508) target = $region40
      $region39: #{dilconv_forward.2} parent=31 // pred_region
        _
      $region40: #{dilconv_forward.2} parent=31 // pred_fallthru
        _
    $region32: #{dilconv_forward.2} parent=5 // pred_fallthru
      _
    %p511 = scmp.le.s32.totalorder 2, %s11
    // Predicated region
    $region41: #{dilconv_forward.2} parent=5 // pred_check
      %p512 = pneg %p511
    $region42: #{dilconv_forward.2} parent=5 // pred_check_branch
      %514 = sbr.rel (%p512) target = $region44
    $region43: #{dilconv_forward.2} parent=5 // pred_region
      %s515 = ssub.s32 %s11, 2
      // Predicated region
      $region45: #{dilconv_forward.2} parent=43 // pred_check
        %p516 = pneg %p122
      $region46: #{dilconv_forward.2} parent=43 // pred_check_branch
        %518 = sbr.rel (%p516) target = $region48
      $region47: #{dilconv_forward.2} parent=43 // pred_region
        %p519 = scmp.lt.s32.totalorder %s22, 1
        %s520 = scalar_select %p519, %s22, 1
        %p521 = scmp.lt.s32.totalorder %s23, 1
        %s522 = scalar_select %p521, %s23, 1
        %s523 = smul.addr %s520, 2
        %s524 = sadd.s32 %s522, %s523
        %s525 = smul.addr %s524, 8
        %s526 = scalar_lea.vmem %s3, %s525
      $region48: #{dilconv_forward.2} parent=43 // pred_fallthru
        _
      // Predicated region
      $region49: #{dilconv_forward.2} parent=43 // pred_check
        %p527 = pneg %p150
      $region50: #{dilconv_forward.2} parent=43 // pred_check_branch
        %529 = sbr.rel (%p527) target = $region52
      $region51: #{dilconv_forward.2} parent=43 // pred_region
        %p530 = scmp.lt.s32.totalorder %s22, 1
        %s531 = scalar_select %p530, %s22, 1
        %p532 = scmp.lt.s32.totalorder %s23, 1
        %s533 = scalar_select %p532, %s23, 1
        %s534 = smul.addr %s531, 2
        %s535 = sadd.s32 %s533, %s534
        %s536 = smul.addr %s535, 2
        %s537 = scalar_lea.vmem %s4, %s536
      $region52: #{dilconv_forward.2} parent=43 // pred_fallthru
        _
    $region44: #{dilconv_forward.2} parent=5 // pred_fallthru
      _
  $region6: #{dilconv_forward.2} parent=0 // loop_footer
    %s15 = sadd.s32 1, %s11
  $region7: #{dilconv_forward.2} parent=0 // loop_footer_branch
    %10 = sbr.rel target = $region3
  $region8: #{dilconv_forward.2} parent=0 // loop_exit
    _

</llo_original>
